<compile_context>
chip_gen: v7x
topology: tpu7x:2x2x1
jax: 0.10.0
libtpu: 0.0.40
codegen_flags: <defaults>
</compile_context>

<pallas_src>
import functools

import jax
import jax.numpy as jnp
from jax.experimental import pallas as pl
from jax.experimental.pallas import tpu as pltpu


def _rmsnorm_kernel(x_ref, w_ref, o_ref, *, eps: float, inv_hidden: float):
    # x_ref: (row_tile, H) block in VMEM; w_ref: (1, H) f32 (resident across
    # the grid, constant block index); o_ref: (row_tile, H).
    #
    # Reduction pass: f32 cast fused into the sum-of-squares consumer.
    xf = x_ref[...].astype(jnp.float32)
    ms = jnp.sum(xf * xf, axis=-1, keepdims=True) * inv_hidden   # mean(x*x)
    inv_rms = jax.lax.rsqrt(ms + eps)                            # EUP rsqrt
    # Normalize pass: re-read/cast per consumer so Mosaic can fuse the cast
    # instead of keeping a full (row_tile, H) f32 temp live across both uses.
    o_ref[...] = (x_ref[...].astype(jnp.float32) * inv_rms * w_ref[...]).astype(o_ref.dtype)


def _round_up(x: int, m: int) -> int:
    return ((x + m - 1) // m) * m


def _tpu_vmem_capacity_bytes() -> int:
    try:
        return int(pltpu.get_tpu_info().vmem_capacity_bytes)
    except Exception:
        # Unknown part (or interpret mode): assume the common 128 MiB parts.
        return 128 * 1024 * 1024


def _choose_tiling(rows: int, hidden: int, itemsize: int) -> tuple[int, int]:
    """Return (row_tile, vmem_limit_bytes) sized for the current TPU generation."""
    vmem_cap = _tpu_vmem_capacity_bytes()
    if vmem_cap <= 64 * 1024 * 1024:
        # v7x-class: 64 MiB physical VMEM per TensorCore, 2 TCs per chip.
        budget = 26 * 1024 * 1024
        vmem_limit = 48 * 1024 * 1024
        want_even_grid = True       # keep the 2 TensorCores load-balanced
    else:
        # v5e / v6e: 128 MiB physical VMEM, single TensorCore.
        budget = 64 * 1024 * 1024
        vmem_limit = 96 * 1024 * 1024
        want_even_grid = False

    # Per-row VMEM: double-buffered input + output blocks (2*2*itemsize B/elem)
    # plus f32 intermediates (cast + normalized product, ~12 B/elem worst case).
    per_row = hidden * (4 * itemsize + 12)
    max_rows_by_vmem = max(8, budget // per_row)

    # Aim for ~8 MiB of input bytes per block so the ~0.35 us/step overhead is
    # well amortized even for small hidden sizes.
    target_rows = max(8, (8 * 1024 * 1024) // (hidden * itemsize))

    # 16-bit dtypes: floor at 16 rows so the smallest block is a packed
    # sublane pair (unmasked stores).
    align = 16 if itemsize <= 2 else 8

    row_tile = align
    for cand in (8192, 4096, 2048, 1024, 512, 256, 128, 64, 32, 16, 8):
        if cand < align:
            break
        if cand <= max_rows_by_vmem and cand <= target_rows:
            row_tile = cand
            break

    # Never allocate a block taller than the (aligned) row count.
    row_tile = min(row_tile, max(align, _round_up(rows, align)))

    # v7x only: round so cdiv(rows, row_tile) is even, keeping both
    # TensorCores busy on the "parallel" grid axis.
    if want_even_grid and rows > row_tile:
        steps = -(-rows // row_tile)
        if steps % 2 == 1:
            row_tile = max(align, _round_up(-(-rows // (steps + 1)), align))

    return row_tile, vmem_limit


def rmsnorm(x: jax.Array,
            weight: jax.Array,
            *,
            eps: float = 1e-6,
            add_unit_offset: bool = False,
            row_tile: int | None = None) -> jax.Array:
    """RMSNorm over the last axis of x, Pallas-TPU implementation."""
    orig_shape = x.shape
    hidden = orig_shape[-1]
    assert weight.shape == (hidden,)

    # Flatten leading dims to rows (metadata-only reshape; no extra HBM pass).
    x2d = x.reshape(-1, hidden)
    rows = x2d.shape[0]
    itemsize = jnp.dtype(x.dtype).itemsize

    auto_row_tile, vmem_limit = _choose_tiling(rows, hidden, itemsize)
    if row_tile is None:
        row_tile = auto_row_tile

    # Parameter glue: unit offset and f32 cast applied once, outside the kernel.
    # NOTE: weight multiply happens in f32 before the final downcast, matching
    # the PyTorch reference `(x_normed * weight.float()).to(dtype)`.
    w_f32 = weight.astype(jnp.float32)
    if add_unit_offset:
        w_f32 = 1.0 + w_f32
    w2d = w_f32.reshape(1, hidden)

    grid = (pl.cdiv(rows, row_tile),)   # no pad: partial last block masked on write

    cost = pl.CostEstimate(
        flops=3 * rows * hidden,                  # x*x, reduce-add, normalize mul
        transcendentals=rows,                     # one rsqrt per row
        bytes_accessed=rows * hidden * 2 * itemsize + hidden * 4,
    )

    out = pl.pallas_call(
        functools.partial(_rmsnorm_kernel, eps=eps, inv_hidden=1.0 / hidden),
        out_shape=jax.ShapeDtypeStruct((rows, hidden), x.dtype),
        grid_spec=pltpu.PrefetchScalarGridSpec(
            num_scalar_prefetch=0,
            grid=grid,
            in_specs=[
                pl.BlockSpec((row_tile, hidden), lambda i: (i, 0)),
                pl.BlockSpec((1, hidden), lambda i: (0, 0)),   # constant block -> resident
            ],
            out_specs=pl.BlockSpec((row_tile, hidden), lambda i: (i, 0)),
        ),
        compiler_params=pltpu.CompilerParams(
            dimension_semantics=("parallel",),
            vmem_limit_bytes=vmem_limit),
        cost_estimate=cost,
    )(x2d, w2d)

    return out.reshape(orig_shape)


if __name__ == "__main__":
    key = jax.random.PRNGKey(0)
    k1, k2, k3 = jax.random.split(key, 3)

    def ref_rmsnorm(x, weight, eps, add_unit_offset):
        # Pure-JAX reference of the PyTorch forward.
        xf = x.astype(jnp.float32)
        norm = jnp.mean(xf * xf, axis=-1, keepdims=True)
        w = weight.astype(jnp.float32)
        if add_unit_offset:
            w = 1.0 + w
        return (xf * jax.lax.rsqrt(norm + eps) * w).astype(x.dtype)

    # Case 1: small shape, weight = ones (module init), bf16 input.
    batch, seq, hidden = 2, 8, 32
    x1 = jax.random.normal(k1, (batch, seq, hidden), dtype=jnp.bfloat16)
    w1 = jnp.ones((hidden,), dtype=jnp.float32)
    y1 = rmsnorm(x1, w1, eps=1e-6, add_unit_offset=False)
    jax.block_until_ready(y1)
    r1 = ref_rmsnorm(x1, w1, 1e-6, False)
    assert jnp.allclose(y1.astype(jnp.float32), r1.astype(jnp.float32),
                        atol=1e-2, rtol=1e-2)

    # Case 2: rows % row_tile != 0 (forced row_tile=8 -> multi-step grid with a
    # partial last block) + add_unit_offset path, f32 input, non-trivial weight.
    batch, seq, hidden = 2, 9, 32
    x2 = jax.random.normal(k2, (batch, seq, hidden), dtype=jnp.float32)
    w2 = 0.1 * jax.random.normal(k3, (hidden,), dtype=jnp.float32)
    y2 = rmsnorm(x2, w2, eps=1e-6, add_unit_offset=True, row_tile=8)
    jax.block_until_ready(y2)
    r2 = ref_rmsnorm(x2, w2, 1e-6, True)
    assert jnp.allclose(y2, r2, atol=1e-5, rtol=1e-4)

    # Case 3: auto tiling path on the same f32 input (exercises _choose_tiling).
    y3 = rmsnorm(x2, w2, eps=1e-6, add_unit_offset=True)
    jax.block_until_ready(y3)
    assert jnp.allclose(y3, r2, atol=1e-5, rtol=1e-4)

    print("KERNEL_OK")
</pallas_src>

<mosaic_0001>
module attributes {stable_mosaic.version = 11 : i64} {
  func.func @_rmsnorm_kernel(%arg0: i32, %arg1: memref<16x32xbf16, #tpu.memory_space<vmem>>, %arg2: memref<1x32xf32, #tpu.memory_space<vmem>>, %arg3: memref<16x32xbf16, #tpu.memory_space<vmem>>) attributes {dimension_semantics = [#tpu.dimension_semantics<parallel>], iteration_bounds = array<i64: 1>, scalar_prefetch = 0 : i64, scratch_operands = 0 : i64, tpu.core_type = #tpu.core_type<tc>, window_params = [{transform_indices = @transform_0, window_bounds = array<i64: 16, 32>}, {pipeline_mode = #tpu.pipeline_mode<synchronous>, transform_indices = @transform_1, window_bounds = array<i64: 1, 32>}, {transform_indices = @transform_2, window_bounds = array<i64: 16, 32>}]} {
    %c0 = arith.constant 0 : index
    %c0_0 = arith.constant 0 : index
    %0 = vector.load %arg1[%c0, %c0_0] : memref<16x32xbf16, #tpu.memory_space<vmem>>, vector<16x32xbf16>
    %1 = arith.extf %0 : vector<16x32xbf16> to vector<16x32xf32>
    %2 = arith.mulf %1, %1 : vector<16x32xf32>
    %cst = arith.constant dense<0.000000e+00> : vector<16xf32>
    %3 = vector.multi_reduction <add>, %2, %cst [1] : vector<16x32xf32> to vector<16xf32>
    %4 = vector.shape_cast %3 : vector<16xf32> to vector<16x1xf32>
    %cst_1 = arith.constant 3.125000e-02 : f32
    %5 = vector.broadcast %cst_1 : f32 to vector<16x1xf32>
    %6 = arith.mulf %4, %5 : vector<16x1xf32>
    %cst_2 = arith.constant 9.99999997E-7 : f32
    %7 = vector.broadcast %cst_2 : f32 to vector<16x1xf32>
    %8 = arith.addf %6, %7 : vector<16x1xf32>
    %9 = math.rsqrt %8 : vector<16x1xf32>
    %c0_3 = arith.constant 0 : index
    %c0_4 = arith.constant 0 : index
    %10 = vector.load %arg1[%c0_3, %c0_4] : memref<16x32xbf16, #tpu.memory_space<vmem>>, vector<16x32xbf16>
    %11 = arith.extf %10 : vector<16x32xbf16> to vector<16x32xf32>
    %12 = vector.broadcast %9 : vector<16x1xf32> to vector<16x32xf32>
    %13 = arith.mulf %11, %12 : vector<16x32xf32>
    %c0_5 = arith.constant 0 : index
    %c0_6 = arith.constant 0 : index
    %14 = vector.load %arg2[%c0_5, %c0_6] : memref<1x32xf32, #tpu.memory_space<vmem>>, vector<1x32xf32>
    %15 = vector.broadcast %14 : vector<1x32xf32> to vector<16x32xf32>
    %16 = arith.mulf %13, %15 : vector<16x32xf32>
    %17 = arith.truncf %16 : vector<16x32xf32> to vector<16x32xbf16>
    %c0_7 = arith.constant 0 : index
    %c0_8 = arith.constant 0 : index
    %18 = vector.load %arg3[%c0_7, %c0_8] : memref<16x32xbf16, #tpu.memory_space<vmem>>, vector<16x32xbf16>
    tpu.vector_store %arg3[%c0_7, %c0_8], %17 {strides = array<i32>} : memref<16x32xbf16, #tpu.memory_space<vmem>>, vector<16x32xbf16>,
    return
  }
  func.func @transform_0(%arg0: i32) -> (i32, i32) {
    %c0_i32 = arith.constant 0 : i32
    %c0_i32_0 = arith.constant 0 : i32
    return %arg0, %c0_i32 : i32, i32
  }
  func.func @transform_1(%arg0: i32) -> (i32, i32) {
    %c0_i32 = arith.constant 0 : i32
    %c0_i32_0 = arith.constant 0 : i32
    %c0_i32_1 = arith.constant 0 : i32
    return %c0_i32, %c0_i32_0 : i32, i32
  }
  func.func @transform_2(%arg0: i32) -> (i32, i32) {
    %c0_i32 = arith.constant 0 : i32
    %c0_i32_0 = arith.constant 0 : i32
    return %arg0, %c0_i32 : i32, i32
  }
}

</mosaic_0001>

<llo_original>
// kernel: tpu_custom_call.1
$region0: #{tpu_custom_call.1}
  #allocation0 [shape = 'u32[]', space=smem, size = 0x4, offset = 0x4, fixed_abs, tag = 'smem constant byte address 0x4 - core index']
  #allocation1 [shape = 'u32[144,128]{1,0:T(1,128)}', space=vmem, size = 0x12000, scoped, tag = 'internal scratch']
  %s0 = inlined_call_operand.hbm [shape: bf16[16,32], index: 0, kind: input, shape index: {}]
  %s1 = inlined_call_operand.hbm [shape: f32[1,32], index: 1, kind: input, shape index: {}]
  %s2 = inlined_call_operand.hbm [shape: bf16[16,32], index: 2, kind: output, shape index: {}]
  %s3 = sld [smem:[#allocation0]]
  $region26: #{tpu_custom_call.1} parent=0
    _
  %s5 = ssub.s32 1, %s3
  %s6 = scalar_select 0, %s5, %s3
  $region1: #{tpu_custom_call.1} parent=0
    #allocation2 [shape = 'u8[4096]{0}', space=vmem, size = 0x1000, scoped, tag = 'input window, operand 0, single buffered']
    #allocation3 [shape = 's32[1]{0}', space=sflag, size = 0x4, scoped, tag = 'scoped memory for tpu_custom_call.1']
    #allocation4 [shape = 's32[1]{0}', space=sflag, size = 0x4, scoped, tag = 'scoped memory for tpu_custom_call.1']
    #allocation5 [shape = 'u8[512]{0}', space=vmem, size = 0x400, scoped, tag = 'input window, operand 1, single buffered']
    #allocation6 [shape = 's32[1]{0}', space=sflag, size = 0x4, scoped, tag = 'scoped memory for tpu_custom_call.1']
    #allocation7 [shape = 'u8[4096]{0}', space=vmem, size = 0x1000, scoped, tag = 'output window, operand 0, single buffered']
    %7 = vsyncpa [#allocation3], 0
    %8 = vsyncpa [#allocation6], 0
    %9 = vsyncpa [#allocation4], 0
    // Predicated region
    $region2: #{tpu_custom_call.1} parent=1 // pred_check
      _
    $region3: #{tpu_custom_call.1} parent=1 // pred_check_branch
      %11 = sbr.rel (0) target = $region5
    $region4: #{tpu_custom_call.1} parent=1 // pred_region
      %s13 = ssub.s32 128, 128
      %14 = vsyncadd [#allocation3], %s13
      %s15 = sshll.u32 [#allocation2], 4
      %s16 = int_to_ptr.vmem [resolvable:$true] %s15
      %21 = dma.hbm_to_vmem [thread:$0]  %s0, 128, %s16, [#allocation3], 64, 64, 4
    $region5: #{tpu_custom_call.1} parent=1 // pred_fallthru
      _
    // Predicated region
    $region6: #{tpu_custom_call.1} parent=1 // pred_check
      _
    $region7: #{tpu_custom_call.1} parent=1 // pred_check_branch
      %23 = sbr.rel (0) target = $region9
    $region8: #{tpu_custom_call.1} parent=1 // pred_region
      %s25 = ssub.s32 16, 16
      %26 = vsyncadd [#allocation6], %s25
      %s28 = sshll.u32 [#allocation5], 4
      %s29 = int_to_ptr.vmem [resolvable:$true] %s28
      %31 = dma.hbm_to_vmem [thread:$0]  %s1, 16, %s29, [#allocation6]
    $region9: #{tpu_custom_call.1} parent=1 // pred_fallthru
      _
    // Predicated region
    $region10: #{tpu_custom_call.1} parent=1 // pred_check
      _
    $region11: #{tpu_custom_call.1} parent=1 // pred_check_branch
      %33 = sbr.rel (0) target = $region13
    $region12: #{tpu_custom_call.1} parent=1 // pred_region
      %34 = dma.done [#allocation3], 128
    $region13: #{tpu_custom_call.1} parent=1 // pred_fallthru
      _
    // Predicated region
    $region14: #{tpu_custom_call.1} parent=1 // pred_check
      _
    $region15: #{tpu_custom_call.1} parent=1 // pred_check_branch
      %36 = sbr.rel (0) target = $region17
    $region16: #{tpu_custom_call.1} parent=1 // pred_region
      %37 = dma.done [#allocation6], 16
    $region17: #{tpu_custom_call.1} parent=1 // pred_fallthru
      _
    %v38 = vld [vmem:[#allocation2] sm:$0xf]
    %v39 = vld [vmem:[#allocation2 + $0x4] sm:$0xf]
    %v40 = vunpack.c.l.bf16 %v38
    %v41 = vunpack.c.l.bf16 %v39
    %v42 = vmul.f32 %v40, %v40
    %v43 = vmul.f32 %v41, %v41
    %vm44 = vcmask 261120
    %v45 = vsel %vm44, %v42, 0.0
    %46 = vadd.xlane.f32.xlu0 %v45
    %v47 = vpop.xlane.xlu0 %46
    %v48 = vsel %vm44, %v43, 0.0
    %49 = vadd.xlane.f32.xlu0 %v48
    %v50 = vpop.xlane.xlu0 %49
    %v51 = vmul.f32 %v47, 0.03125
    %v52 = vmul.f32 %v50, 0.03125
    %v53 = vadd.f32 %v51, 1e-06
    %v54 = vadd.f32 %v52, 1e-06
    %v55 = vrsqrt.pop %v53
    %v56 = vrsqrt.pop %v54
    %v57 = vmul.f32 %v40, %v55
    %v58 = vmul.f32 %v41, %v56
    %v59 = vld [vmem:[#allocation5] sm:$0x1]
    %v61 = vlaneseq
    %v62 = vshrl.u32 %v61, 7
    %v63 = vsub.s32 0, %v62
    %v64 = vrot.slane %v59, %v63
    %v66 = vmul.f32 %v57, %v64
    %v67 = vmul.f32 %v58, %v64
    %v68 = vpack.c.bf16 %v67, %v66
    %v70 = vunpack.c.l.b16 %v68
    %v71 = vunpack.c.h.b16 %v68
    %v72 = vpack.c.b16 %v70, %v70
    %v73 = vpack.c.b16 %v71, %v71
    %vm76 = vcmask 257024
    %77 = vst.msk [vmem:[#allocation7] sm:$0xf] %vm76, %v72
    %78 = vst.msk [vmem:[#allocation7 + $0x4] sm:$0xf] %vm76, %v73
    // Predicated region
    $region18: #{tpu_custom_call.1} parent=1 // pred_check
      _
    $region19: #{tpu_custom_call.1} parent=1 // pred_check_branch
      %80 = sbr.rel (0) target = $region21
    $region20: #{tpu_custom_call.1} parent=1 // pred_region
      %s82 = ssub.s32 128, 128
      %83 = vsyncadd [#allocation4], %s82
      %s84 = sshll.u32 [#allocation7], 4
      %s85 = int_to_ptr.vmem [resolvable:$true] %s84
      %90 = dma.vmem_to_hbm [thread:$0]  %s85, 128, %s2, [#allocation4], 64, 64, 4
    $region21: #{tpu_custom_call.1} parent=1 // pred_fallthru
      _
    // Predicated region
    $region22: #{tpu_custom_call.1} parent=1 // pred_check
      _
    $region23: #{tpu_custom_call.1} parent=1 // pred_check_branch
      %92 = sbr.rel (0) target = $region25
    $region24: #{tpu_custom_call.1} parent=1 // pred_region
      %93 = dma.done [#allocation4], 128
    $region25: #{tpu_custom_call.1} parent=1 // pred_fallthru
      _
    %94 = vsyncpa [#allocation3], 1
    %95 = vsyncpa [#allocation6], 1
    %96 = vsyncpa [#allocation4], 1

</llo_original>
